<compile_context>
chip_gen: v6e
topology: v6e:2x2x1
jax: 0.10.0
libtpu: 0.0.40
codegen_flags: <defaults>
</compile_context>

<pallas_src>
import functools
import math

import jax
import jax.numpy as jnp
from jax.experimental import pallas as pl
from jax.experimental.pallas import tpu as pltpu

BN_EPS = 1e-5
NEG_SLOPE = 0.2


def _c1d_kernel(x_ref, w_ref, bn_ref, out_ref, *, n_taps, pad):
    """One batch chunk: fused K-tap Conv1d + folded BatchNorm(eval) + LeakyReLU(0.2)."""
    bblk, frame_l, feat = x_ref.shape
    filters = out_ref.shape[1] // frame_l
    rows = bblk * frame_l

    x = x_ref[...]                                    # (bblk, frame_l, feat), bf16

    # Build the K shifted frame-windows (im2col) in registers.  Tap k reads source
    # frame t + (k - pad); out-of-range frames are the conv's zero padding, produced
    # here by concatenating zero slabs (no HBM pad copy, stays in VMEM/vregs).
    windows = []
    for k in range(n_taps):                           # static unroll (K is small)
        s = k - pad
        if s == 0:
            win = x
        elif s > 0:
            if s >= frame_l:
                win = jnp.zeros_like(x)
            else:
                zpad = jnp.zeros((bblk, s, feat), x.dtype)
                win = jnp.concatenate([x[:, s:, :], zpad], axis=1)
        else:
            m = -s
            if m >= frame_l:
                win = jnp.zeros_like(x)
            else:
                zpad = jnp.zeros((bblk, m, feat), x.dtype)
                win = jnp.concatenate([zpad, x[:, :frame_l - m, :]], axis=1)
        windows.append(win)

    xcat = windows[0] if n_taps == 1 else jnp.concatenate(windows, axis=-1)
    xcat = xcat.reshape(rows, n_taps * feat)          # leading-dim merge (cheap if frame_l%8==0)

    # Single fused MXU matmul over the K*feat contraction, f32 accumulation.
    acc = jnp.dot(xcat, w_ref[...], preferred_element_type=jnp.float32)

    # Folded eval-mode BatchNorm1d: per-frame scale/shift broadcast over batch & filters.
    bn = bn_ref[...].astype(jnp.float32)              # (frame_l, 2)
    scale = bn[:, 0:1].reshape(1, frame_l, 1)
    shift = bn[:, 1:2].reshape(1, frame_l, 1)
    y = acc.reshape(bblk, frame_l, filters) * scale + shift
    y = jnp.where(y > 0.0, y, NEG_SLOPE * y)          # LeakyReLU(0.2)

    # Lane-dense store: (bblk, frame_l*filters) slab (repack lands in the XLU slot).
    out_ref[...] = y.reshape(bblk, frame_l * filters).astype(out_ref.dtype)


def _pick_block_batch(batch, bytes_per_sample, *, budget_bytes, num_tensorcores=1):
    """Largest batch chunk that divides B, respects the VMEM byte budget and the
    Mosaic sublane rule (chunk is the output block's sublane dim when splitting),
    and -- if num_tensorcores > 1 (v7x) -- leaves a grid that splits evenly."""
    divs = [d for d in range(1, batch + 1) if batch % d == 0]
    legal = [d for d in divs if d == batch or d % 8 == 0]
    fits = [d for d in legal if d * bytes_per_sample <= budget_bytes]
    if not fits:
        # Soft budget: a single maximal block is always layout-legal.
        return batch
    if num_tensorcores > 1:
        multi = [d for d in fits
                 if batch // d >= num_tensorcores and (batch // d) % num_tensorcores == 0]
        if multi:
            return max(multi)
    return max(fits)


def c1d_forward(x, params, kernel, *, block_batch=None, out_dtype=jnp.float32,
                compute_dtype=jnp.bfloat16, vmem_budget_bytes=16 * 1024 * 1024,
                num_tensorcores=1):
    B, frame_l, feat = x.shape
    filters = params["conv_w"].shape[0]
    assert params["conv_w"].shape == (filters, feat, kernel)
    pad = math.ceil((kernel - 1) / 2)

    in_bytes = jnp.dtype(compute_dtype).itemsize
    out_bytes = jnp.dtype(out_dtype).itemsize
    # Per-sample VMEM: double-buffered x + out blocks, plus in-kernel im2col & f32 acc.
    bytes_per_sample = (2 * frame_l * feat * in_bytes
                        + 2 * frame_l * filters * out_bytes
                        + frame_l * kernel * feat * in_bytes
                        + frame_l * filters * 4)
    bblk = block_batch or _pick_block_batch(B, bytes_per_sample,
                                            budget_bytes=vmem_budget_bytes,
                                            num_tensorcores=num_tensorcores)
    assert B % bblk == 0
    n_blocks = B // bblk

    # ---- parameter glue (plain JAX, outside the kernel) ----
    # bf16 operands for the MXU (in a real pipeline x would already arrive in bf16).
    x_c = x.astype(compute_dtype)
    # Conv1d weight (filters, feat, K) -> single stacked (K*feat, filters) matrix,
    # tap-major so it lines up with the in-kernel lane-concat of the K windows.
    w = jnp.transpose(params["conv_w"], (2, 1, 0)).reshape(kernel * feat, filters)
    w = w.astype(compute_dtype)
    # Folded eval-mode BatchNorm1d: one (frame_l, 2) scale/shift array (no tiling).
    scale = params["bn_gamma"] / jnp.sqrt(params["bn_rv"] + BN_EPS)
    shift = params["bn_beta"] - params["bn_rm"] * scale
    bn = jnp.stack([scale, shift], axis=-1).astype(jnp.float32)

    kern = functools.partial(_c1d_kernel, n_taps=kernel, pad=pad)

    out = pl.pallas_call(
        kern,
        out_shape=jax.ShapeDtypeStruct((B, frame_l * filters), out_dtype),
        grid=(n_blocks,),
        in_specs=[
            # x is the only per-step-varying stream; weights/BN stay resident.
            pl.BlockSpec((bblk, frame_l, feat), lambda b: (b, 0, 0)),
            pl.BlockSpec((kernel * feat, filters), lambda b: (0, 0)),
            pl.BlockSpec((frame_l, 2), lambda b: (0, 0)),
        ],
        out_specs=pl.BlockSpec((bblk, frame_l * filters), lambda b: (b, 0)),
        compiler_params=pltpu.CompilerParams(
            dimension_semantics=("parallel",),
            vmem_limit_bytes=32 * 1024 * 1024),
    )(x_c, w, bn)

    return out.reshape(B, frame_l, filters)


def reference_forward(x, params, kernel, operand_dtype=None):
    """Pure-JAX mirror of the PyTorch eval-mode c1D.forward.  If operand_dtype is
    given, the conv operands are rounded through it (to match the kernel's bf16
    operand precision) while all arithmetic stays f32."""
    pad = math.ceil((kernel - 1) / 2)
    w = params["conv_w"]
    if operand_dtype is not None:
        x = x.astype(operand_dtype).astype(jnp.float32)
        w = w.astype(operand_dtype).astype(jnp.float32)
    x_ncw = jnp.transpose(x, (0, 2, 1))                       # (B, feat, frame_l)
    y = jax.lax.conv_general_dilated(
        x_ncw, w, window_strides=(1,), padding=[(pad, pad)],
        dimension_numbers=("NCH", "OIH", "NCH"),
        precision=jax.lax.Precision.HIGHEST)
    if kernel % 2 == 0:                                       # cut_last_element
        y = y[:, :, :-1]
    y = jnp.transpose(y, (0, 2, 1))                           # (B, frame_l, filters)
    scale = params["bn_gamma"] / jnp.sqrt(params["bn_rv"] + BN_EPS)
    shift = params["bn_beta"] - params["bn_rm"] * scale
    y = y * scale[None, :, None] + shift[None, :, None]
    return jnp.where(y > 0.0, y, NEG_SLOPE * y)


def make_params(key, frame_l, feat, filters, kernel):
    ks = jax.random.split(key, 5)
    n = lambda k, s, sc=0.1: (sc * jax.random.normal(k, s)).astype(jnp.float32)
    return {
        "conv_w": n(ks[0], (filters, feat, kernel), 0.2),     # Conv1d weight (no bias)
        "bn_gamma": 1.0 + n(ks[1], (frame_l,), 0.05),
        "bn_beta": n(ks[2], (frame_l,), 0.05),
        "bn_rm": n(ks[3], (frame_l,), 0.05),
        "bn_rv": jax.random.uniform(ks[4], (frame_l,), jnp.float32, 0.5, 1.5),
    }


if __name__ == "__main__":
    frame_l, joint_n, joint_d, filters = 16, 4, 4, 32
    feat = joint_n * joint_d                                  # input_dims

    key = jax.random.PRNGKey(0)
    kx, kp = jax.random.split(key)

    # Exercise: odd kernel, even kernel (cut_last_element), 1x1 conv, and a
    # multi-block grid (bblk < B, bblk % 8 == 0).
    cases = [(8, 3, None), (8, 2, None), (8, 1, None), (32, 3, 8)]
    for B, kernel, bblk in cases:
        x = jax.random.normal(jax.random.fold_in(kx, B),
                              (B, frame_l, feat), dtype=jnp.float32)
        params = make_params(jax.random.fold_in(kp, kernel),
                             frame_l, feat, filters, kernel)

        out = jax.block_until_ready(
            c1d_forward(x, params, kernel, block_batch=bblk))
        assert out.shape == (B, frame_l, filters), out.shape

        # Tight check against a reference with matched (bf16) operand rounding.
        ref_bf16 = reference_forward(x, params, kernel, operand_dtype=jnp.bfloat16)
        err = float(jnp.max(jnp.abs(out - ref_bf16)))
        assert jnp.allclose(out, ref_bf16, rtol=2e-3, atol=2e-3), (B, kernel, err)

        # Coarse check against the exact f32 PyTorch-semantics reference.
        ref_f32 = reference_forward(x, params, kernel)
        err32 = float(jnp.max(jnp.abs(out - ref_f32)))
        assert jnp.allclose(out, ref_f32, rtol=6e-2, atol=6e-2), (B, kernel, err32)

    print("KERNEL_OK")
</pallas_src>

<mosaic_0001>
module attributes {stable_mosaic.version = 11 : i64} {
  func.func @_c1d_kernel(%arg0: i32, %arg1: memref<8x16x16xbf16, #tpu.memory_space<vmem>>, %arg2: memref<48x32xbf16, #tpu.memory_space<vmem>>, %arg3: memref<16x2xf32, #tpu.memory_space<vmem>>, %arg4: memref<8x512xf32, #tpu.memory_space<vmem>>) attributes {dimension_semantics = [#tpu.dimension_semantics<parallel>], iteration_bounds = array<i64: 1>, scalar_prefetch = 0 : i64, scratch_operands = 0 : i64, tpu.core_type = #tpu.core_type<tc>, window_params = [{transform_indices = @transform_0, window_bounds = array<i64: 8, 16, 16>}, {pipeline_mode = #tpu.pipeline_mode<synchronous>, transform_indices = @transform_1, window_bounds = array<i64: 48, 32>}, {pipeline_mode = #tpu.pipeline_mode<synchronous>, transform_indices = @transform_2, window_bounds = array<i64: 16, 2>}, {transform_indices = @transform_3, window_bounds = array<i64: 8, 512>}]} {
    %c0 = arith.constant 0 : index
    %c0_0 = arith.constant 0 : index
    %c0_1 = arith.constant 0 : index
    %0 = vector.load %arg1[%c0, %c0_0, %c0_1] : memref<8x16x16xbf16, #tpu.memory_space<vmem>>, vector<8x16x16xbf16>
    %cst = arith.constant 0.000000e+00 : bf16
    %1 = vector.broadcast %cst : bf16 to vector<8x1x16xbf16>
    %2 = vector.extract_strided_slice %0 {offsets = [0, 0, 0], sizes = [8, 15, 16], strides = [1, 1, 1]} : vector<8x16x16xbf16> to vector<8x15x16xbf16>
    %3 = tpu.concatenate %1, %2 in 1 : vector<8x1x16xbf16>, vector<8x15x16xbf16> -> vector<8x16x16xbf16>
    %cst_2 = arith.constant 0.000000e+00 : bf16
    %4 = vector.broadcast %cst_2 : bf16 to vector<8x1x16xbf16>
    %5 = vector.extract_strided_slice %0 {offsets = [0, 1, 0], sizes = [8, 15, 16], strides = [1, 1, 1]} : vector<8x16x16xbf16> to vector<8x15x16xbf16>
    %6 = tpu.concatenate %5, %4 in 1 : vector<8x15x16xbf16>, vector<8x1x16xbf16> -> vector<8x16x16xbf16>
    %7 = tpu.concatenate %3, %0, %6 in 2 : vector<8x16x16xbf16>, vector<8x16x16xbf16>, vector<8x16x16xbf16> -> vector<8x16x48xbf16>
    %8 = vector.shape_cast %7 : vector<8x16x48xbf16> to vector<128x48xbf16>
    %c0_3 = arith.constant 0 : index
    %c0_4 = arith.constant 0 : index
    %9 = vector.load %arg2[%c0_3, %c0_4] : memref<48x32xbf16, #tpu.memory_space<vmem>>, vector<48x32xbf16>
    %cst_5 = arith.constant dense<0.000000e+00> : vector<128x32xf32>
    %10 = tpu.matmul %8, %9, %cst_5 {dimension_numbers = #tpu.dot_dimension_numbers<[1], [0], [0], [1], [0, 0, 1, 1], [], []>} : vector<128x48xbf16>, vector<48x32xbf16>, vector<128x32xf32> -> vector<128x32xf32>
    %c0_6 = arith.constant 0 : index
    %c0_7 = arith.constant 0 : index
    %11 = vector.load %arg3[%c0_6, %c0_7] : memref<16x2xf32, #tpu.memory_space<vmem>>, vector<16x2xf32>
    %12 = vector.extract_strided_slice %11 {offsets = [0, 0], sizes = [16, 1], strides = [1, 1]} : vector<16x2xf32> to vector<16x1xf32>
    %13 = vector.shape_cast %12 : vector<16x1xf32> to vector<1x16x1xf32>
    %14 = vector.extract_strided_slice %11 {offsets = [0, 1], sizes = [16, 1], strides = [1, 1]} : vector<16x2xf32> to vector<16x1xf32>
    %15 = vector.shape_cast %14 : vector<16x1xf32> to vector<1x16x1xf32>
    %16 = vector.shape_cast %10 : vector<128x32xf32> to vector<8x16x32xf32>
    %17 = vector.broadcast %13 : vector<1x16x1xf32> to vector<8x16x32xf32>
    %18 = arith.mulf %16, %17 : vector<8x16x32xf32>
    %19 = vector.broadcast %15 : vector<1x16x1xf32> to vector<8x16x32xf32>
    %20 = arith.addf %18, %19 : vector<8x16x32xf32>
    %cst_8 = arith.constant 0.000000e+00 : f32
    %21 = vector.broadcast %cst_8 : f32 to vector<8x16x32xf32>
    %22 = arith.cmpf ogt, %20, %21 : vector<8x16x32xf32>
    %cst_9 = arith.constant 2.000000e-01 : f32
    %23 = vector.broadcast %cst_9 : f32 to vector<8x16x32xf32>
    %24 = arith.mulf %23, %20 : vector<8x16x32xf32>
    %25 = arith.select %22, %20, %24 : vector<8x16x32xi1>, vector<8x16x32xf32>
    %26 = vector.shape_cast %25 : vector<8x16x32xf32> to vector<8x512xf32>
    %c0_10 = arith.constant 0 : index
    %c0_11 = arith.constant 0 : index
    %27 = vector.load %arg4[%c0_10, %c0_11] : memref<8x512xf32, #tpu.memory_space<vmem>>, vector<8x512xf32>
    tpu.vector_store %arg4[%c0_10, %c0_11], %26 {strides = array<i32>} : memref<8x512xf32, #tpu.memory_space<vmem>>, vector<8x512xf32>,
    return
  }
  func.func @transform_0(%arg0: i32) -> (i32, i32, i32) {
    %c0_i32 = arith.constant 0 : i32
    %c0_i32_0 = arith.constant 0 : i32
    %c0_i32_1 = arith.constant 0 : i32
    return %arg0, %c0_i32, %c0_i32_0 : i32, i32, i32
  }
  func.func @transform_1(%arg0: i32) -> (i32, i32) {
    %c0_i32 = arith.constant 0 : i32
    %c0_i32_0 = arith.constant 0 : i32
    %c0_i32_1 = arith.constant 0 : i32
    return %c0_i32, %c0_i32_0 : i32, i32
  }
  func.func @transform_2(%arg0: i32) -> (i32, i32) {
    %c0_i32 = arith.constant 0 : i32
    %c0_i32_0 = arith.constant 0 : i32
    %c0_i32_1 = arith.constant 0 : i32
    return %c0_i32, %c0_i32_0 : i32, i32
  }
  func.func @transform_3(%arg0: i32) -> (i32, i32) {
    %c0_i32 = arith.constant 0 : i32
    %c0_i32_0 = arith.constant 0 : i32
    return %arg0, %c0_i32 : i32, i32
  }
}

</mosaic_0001>

<llo_original>
// kernel: tpu_custom_call.1
$region0: #{tpu_custom_call.1}
  #allocation0 [shape = 'u32[]', space=smem, size = 0x4, offset = 0x4, fixed_abs, tag = 'smem constant byte address 0x4 - core index']
  #allocation1 [shape = 'u32[144,128]{1,0:T(1,128)}', space=vmem, size = 0x12000, scoped, tag = 'internal scratch']
  %s0 = inlined_call_operand.hbm [shape: bf16[8,16,16], index: 0, kind: input, shape index: {}]
  %s1 = inlined_call_operand.vmem [shape: bf16[48,32], index: 1, kind: input, shape index: {}]
  %s2 = inlined_call_operand.vmem [shape: f32[16,2], index: 2, kind: input, shape index: {}]
  %s3 = inlined_call_operand.hbm [shape: f32[8,512], index: 3, kind: output, shape index: {}]
  %s4 = sld [smem:[#allocation0]]
  $region26: #{tpu_custom_call.1} parent=0
    _
  %s6 = ssub.s32 1, %s4
  %s7 = scalar_select 0, %s6, %s4
  $region1: #{tpu_custom_call.1} parent=0
    #allocation2 [shape = 'u8[32768]{0}', space=vmem, size = 0x8000, scoped, tag = 'input window, operand 0, single buffered']
    #allocation3 [shape = 's32[1]{0}', space=sflag, size = 0x4, scoped, tag = 'scoped memory for tpu_custom_call.1']
    #allocation4 [shape = 's32[1]{0}', space=sflag, size = 0x4, scoped, tag = 'scoped memory for tpu_custom_call.1']
    #allocation5 [shape = 'u8[16384]{0}', space=vmem, size = 0x4000, scoped, tag = 'output window, operand 0, single buffered']
    %8 = vsyncpa [#allocation3], 0
    %9 = vsyncpa [#allocation4], 0
    // Predicated region
    $region2: #{tpu_custom_call.1} parent=1 // pred_check
      _
    $region3: #{tpu_custom_call.1} parent=1 // pred_check_branch
      %11 = sbr.rel (0) target = $region5
    $region4: #{tpu_custom_call.1} parent=1 // pred_region
      %s13 = ssub.s32 1024, 1024
      %14 = vsyncadd [#allocation3], %s13
      %s15 = sshll.u32 [#allocation2], 4
      %s16 = int_to_ptr.vmem [resolvable:$true] %s15
      %21 = dma.hbm_to_vmem [thread:$0]  %s0, 1024, %s16, [#allocation3], 64, 64, 4
    $region5: #{tpu_custom_call.1} parent=1 // pred_fallthru
      _
    // Predicated region
    $region6: #{tpu_custom_call.1} parent=1 // pred_check
      _
    $region7: #{tpu_custom_call.1} parent=1 // pred_check_branch
      %23 = sbr.rel (0) target = $region9
    $region8: #{tpu_custom_call.1} parent=1 // pred_region
      _
    $region9: #{tpu_custom_call.1} parent=1 // pred_fallthru
      _
    // Predicated region
    $region10: #{tpu_custom_call.1} parent=1 // pred_check
      _
    $region11: #{tpu_custom_call.1} parent=1 // pred_check_branch
      %25 = sbr.rel (0) target = $region13
    $region12: #{tpu_custom_call.1} parent=1 // pred_region
      _
    $region13: #{tpu_custom_call.1} parent=1 // pred_fallthru
      _
    // Predicated region
    $region14: #{tpu_custom_call.1} parent=1 // pred_check
      _
    $region15: #{tpu_custom_call.1} parent=1 // pred_check_branch
      %27 = sbr.rel (0) target = $region17
    $region16: #{tpu_custom_call.1} parent=1 // pred_region
      %28 = dma.done [#allocation3], 1024
    $region17: #{tpu_custom_call.1} parent=1 // pred_fallthru
      _
    %v30 = vld [vmem:[#allocation2] sm:$0xf]
    %v31 = vld [vmem:[#allocation2 + $0x4] sm:$0xf]
    %v32 = vld [vmem:[#allocation2 + $0x8] sm:$0xf]
    %v33 = vld [vmem:[#allocation2 + $0xc] sm:$0xf]
    %v34 = vld [vmem:[#allocation2 + $0x10] sm:$0xf]
    %v35 = vld [vmem:[#allocation2 + $0x14] sm:$0xf]
    %v36 = vld [vmem:[#allocation2 + $0x18] sm:$0xf]
    %v37 = vld [vmem:[#allocation2 + $0x1c] sm:$0xf]
    %v38 = vld [vmem:[#allocation2 + $0x20] sm:$0xf]
    %v39 = vld [vmem:[#allocation2 + $0x24] sm:$0xf]
    %v40 = vld [vmem:[#allocation2 + $0x28] sm:$0xf]
    %v41 = vld [vmem:[#allocation2 + $0x2c] sm:$0xf]
    %v42 = vld [vmem:[#allocation2 + $0x30] sm:$0xf]
    %v43 = vld [vmem:[#allocation2 + $0x34] sm:$0xf]
    %v44 = vld [vmem:[#allocation2 + $0x38] sm:$0xf]
    %v45 = vld [vmem:[#allocation2 + $0x3c] sm:$0xf]
    %v62 = vunpack.c.l.b16 %v30
    %v63 = vunpack.c.l.b16 %v31
    %v64 = vunpack.c.l.b16 %v32
    %v65 = vunpack.c.l.b16 %v33
    %v66 = vunpack.c.l.b16 %v34
    %v67 = vunpack.c.l.b16 %v35
    %v68 = vunpack.c.l.b16 %v36
    %v69 = vunpack.c.l.b16 %v37
    %v70 = vunpack.c.l.b16 %v38
    %v71 = vunpack.c.l.b16 %v39
    %v72 = vunpack.c.l.b16 %v40
    %v73 = vunpack.c.l.b16 %v41
    %v74 = vunpack.c.l.b16 %v42
    %v75 = vunpack.c.l.b16 %v43
    %v76 = vunpack.c.l.b16 %v44
    %v77 = vunpack.c.l.b16 %v45
    %v78 = vpack.c.b16 %v63, %v62
    %v79 = vpack.c.b16 %v65, %v64
    %v80 = vpack.c.b16 %v67, %v66
    %v81 = vpack.c.b16 %v69, %v68
    %v82 = vpack.c.b16 %v71, %v70
    %v83 = vpack.c.b16 %v73, %v72
    %v84 = vpack.c.b16 %v75, %v74
    %v85 = vpack.c.b16 %v77, %v76
    %v87 = vshrl.u32 %v78, 16
    %v89 = vrot.slane %v87, 7
    %v90 = vshll.u32 %v78, 16
    %v92 = vor.u32 %v89, %v90
    %v94 = vshrl.u32 %v79, 16
    %v96 = vrot.slane %v94, 7
    %v97 = vshll.u32 %v79, 16
    %v99 = vor.u32 %v96, %v97
    %v101 = vshrl.u32 %v80, 16
    %v103 = vrot.slane %v101, 7
    %v104 = vshll.u32 %v80, 16
    %v106 = vor.u32 %v103, %v104
    %v108 = vshrl.u32 %v81, 16
    %v110 = vrot.slane %v108, 7
    %v111 = vshll.u32 %v81, 16
    %v113 = vor.u32 %v110, %v111
    %v115 = vshrl.u32 %v82, 16
    %v117 = vrot.slane %v115, 7
    %v118 = vshll.u32 %v82, 16
    %v120 = vor.u32 %v117, %v118
    %v122 = vshrl.u32 %v83, 16
    %v124 = vrot.slane %v122, 7
    %v125 = vshll.u32 %v83, 16
    %v127 = vor.u32 %v124, %v125
    %v129 = vshrl.u32 %v84, 16
    %v131 = vrot.slane %v129, 7
    %v132 = vshll.u32 %v84, 16
    %v134 = vor.u32 %v131, %v132
    %v136 = vshrl.u32 %v85, 16
    %v138 = vrot.slane %v136, 7
    %v139 = vshll.u32 %v85, 16
    %v141 = vor.u32 %v138, %v139
    %vm150 = vcmask 1040384
    %vm151 = vsmask.f32 256
    %vm152 = vmand %vm150, %vm151
    %v153 = vsel %vm152, 0, %v92
    %v154 = vsel %vm152, 0, %v99
    %v155 = vsel %vm152, 0, %v106
    %v156 = vsel %vm152, 0, %v113
    %v157 = vsel %vm152, 0, %v120
    %v158 = vsel %vm152, 0, %v127
    %v159 = vsel %vm152, 0, %v134
    %v160 = vsel %vm152, 0, %v141
    %v161 = vrot.slane %v90, 1
    %v162 = vor.u32 %v87, %v161
    %v163 = vrot.slane %v97, 1
    %v164 = vor.u32 %v94, %v163
    %v165 = vrot.slane %v104, 1
    %v166 = vor.u32 %v101, %v165
    %v167 = vrot.slane %v111, 1
    %v168 = vor.u32 %v108, %v167
    %v169 = vrot.slane %v118, 1
    %v170 = vor.u32 %v115, %v169
    %v171 = vrot.slane %v125, 1
    %v172 = vor.u32 %v122, %v171
    %v173 = vrot.slane %v132, 1
    %v174 = vor.u32 %v129, %v173
    %v175 = vrot.slane %v139, 1
    %v176 = vor.u32 %v136, %v175
    %vm185 = vcmask 1047552
    %vm186 = vsmask.f32 7424
    %vm187 = vmand %vm185, %vm186
    %v188 = vsel %vm187, %v162, 0
    %v189 = vsel %vm187, %v164, 0
    %v190 = vsel %vm187, %v166, 0
    %v191 = vsel %vm187, %v168, 0
    %v192 = vsel %vm187, %v170, 0
    %v193 = vsel %vm187, %v172, 0
    %v194 = vsel %vm187, %v174, 0
    %v195 = vsel %vm187, %v176, 0
    %196 = vrot.lane.b32.xlu0 %v78, 16
    %v197 = vpop.permute.xlu0 %196
    %198 = vrot.lane.b32.xlu0 %v79, 16
    %v199 = vpop.permute.xlu0 %198
    %200 = vrot.lane.b32.xlu0 %v80, 16
    %v201 = vpop.permute.xlu0 %200
    %202 = vrot.lane.b32.xlu0 %v81, 16
    %v203 = vpop.permute.xlu0 %202
    %204 = vrot.lane.b32.xlu0 %v82, 16
    %v205 = vpop.permute.xlu0 %204
    %206 = vrot.lane.b32.xlu0 %v83, 16
    %v207 = vpop.permute.xlu0 %206
    %208 = vrot.lane.b32.xlu0 %v84, 16
    %v209 = vpop.permute.xlu0 %208
    %210 = vrot.lane.b32.xlu0 %v85, 16
    %v211 = vpop.permute.xlu0 %210
    %220 = vrot.lane.b32.xlu0 %v188, 32
    %v221 = vpop.permute.xlu0 %220
    %222 = vrot.lane.b32.xlu0 %v189, 32
    %v223 = vpop.permute.xlu0 %222
    %224 = vrot.lane.b32.xlu0 %v190, 32
    %v225 = vpop.permute.xlu0 %224
    %226 = vrot.lane.b32.xlu0 %v191, 32
    %v227 = vpop.permute.xlu0 %226
    %228 = vrot.lane.b32.xlu0 %v192, 32
    %v229 = vpop.permute.xlu0 %228
    %230 = vrot.lane.b32.xlu0 %v193, 32
    %v231 = vpop.permute.xlu0 %230
    %232 = vrot.lane.b32.xlu0 %v194, 32
    %v233 = vpop.permute.xlu0 %232
    %234 = vrot.lane.b32.xlu0 %v195, 32
    %v235 = vpop.permute.xlu0 %234
    %vm236 = vcmask 130048
    %v239 = vsel %vm236, %v153, %v197
    %v242 = vsel %vm236, %v154, %v199
    %v245 = vsel %vm236, %v155, %v201
    %v248 = vsel %vm236, %v156, %v203
    %v251 = vsel %vm236, %v157, %v205
    %v254 = vsel %vm236, %v158, %v207
    %v257 = vsel %vm236, %v159, %v209
    %v260 = vsel %vm236, %v160, %v211
    %vm261 = vcmask 261120
    %v263 = vsel %vm261, %v239, %v221
    %v265 = vsel %vm261, %v242, %v223
    %v267 = vsel %vm261, %v245, %v225
    %v269 = vsel %vm261, %v248, %v227
    %v271 = vsel %vm261, %v251, %v229
    %v273 = vsel %vm261, %v254, %v231
    %v275 = vsel %vm261, %v257, %v233
    %v277 = vsel %vm261, %v260, %v235
    %v278 = vld [vmem:[%s1] sm:$0xf]
    %v279 = vld [vmem:[%s1 + $0x4] sm:$0xf]
    %v280 = vld [vmem:[%s1 + $0x8] sm:$0xf]
    %v281 = vld [vmem:[%s1 + $0xc] sm:$0xf]
    %v282 = vld [vmem:[%s1 + $0x10] sm:$0xf]
    %v283 = vld [vmem:[%s1 + $0x14] sm:$0xf]
    %v290 = vunpack.c.l.b16 %v278
    %v291 = vunpack.c.l.b16 %v279
    %v292 = vunpack.c.l.b16 %v280
    %v293 = vunpack.c.l.b16 %v281
    %v294 = vunpack.c.l.b16 %v282
    %v295 = vunpack.c.l.b16 %v283
    %v296 = vpack.c.b16 %v291, %v290
    %v297 = vpack.c.b16 %v293, %v292
    %v298 = vpack.c.b16 %v295, %v294
    %vm302 = vcmask 392192
    %v303 = vsel %vm302, %v263, 0
    %v305 = vsel %vm302, %v265, 0
    %v307 = vsel %vm302, %v267, 0
    %v309 = vsel %vm302, %v269, 0
    %v311 = vsel %vm302, %v271, 0
    %v313 = vsel %vm302, %v273, 0
    %v315 = vsel %vm302, %v275, 0
    %v317 = vsel %vm302, %v277, 0
    %319 = vmatprep.subr.bf16.mxu0 0
    %320 = vmatpush1.bf16.msra.mxu0 0
    %321 = vmatprep.subr.bf16.mxu0 0
    %322 = vmatpush1.bf16.msra.mxu0 0
    %323 = vmatprep.subr.bf16.mxu0 0
    %324 = vmatpush1.bf16.msra.mxu0 0
    %325 = vmatprep.subr.bf16.mxu0 0
    %326 = vmatpush1.bf16.msra.mxu0 0
    %327 = vmatprep.subr.bf16.mxu0 0
    %328 = vmatpush1.bf16.msra.mxu0 0
    %329 = vmatprep.subr.bf16.mxu0 0
    %330 = vmatpush1.bf16.msra.mxu0 %v298
    %331 = vmatprep.subr.bf16.mxu0 0
    %332 = vmatpush1.bf16.msra.mxu0 %v297
    %333 = vmatprep.subr.bf16.mxu0 0
    %334 = vmatpush1.bf16.msra.mxu0 %v296
    %335 = vmatprep.subr.bf16.mxu0 0
    %336 = vmatpush2.bf16.msra.mxu0 0
    %337 = vmatprep.subr.bf16.mxu0 0
    %338 = vmatpush2.bf16.msra.mxu0 0
    %339 = vmatprep.subr.bf16.mxu0 0
    %340 = vmatpush2.bf16.msra.mxu0 0
    %341 = vmatprep.subr.bf16.mxu0 0
    %342 = vmatpush2.bf16.msra.mxu0 0
    %343 = vmatprep.subr.bf16.mxu0 0
    %344 = vmatpush2.bf16.msra.mxu0 0
    %345 = vmatprep.subr.bf16.mxu0 0
    %346 = vmatpush2.bf16.msra.mxu0 0
    %347 = vmatprep.subr.bf16.mxu0 0
    %348 = vmatpush2.bf16.msra.mxu0 0
    %349 = vmatprep.subr.bf16.mxu0 0
    %350 = vmatpush2.bf16.msra.mxu0 0
    %351 = vmatprep.mubr.bf16.mxu0 0
    %352 = vmatmul.mubr.bf16.gmra.mxu0 %v303
    %v353 = vpop.f32.mrf.mxu0
    %v354 = vadd.f32 0.0, %v353
    %v355 = vpop.f32.mrf.mxu0
    %v356 = vpop.f32.mrf.mxu0
    %v357 = vadd.f32 0.0, %v356
    %v358 = vpop.f32.mrf.mxu0
    %359 = vmatprep.mubr.bf16.mxu0 0
    %360 = vmatmul.mubr.bf16.gmra.mxu0 %v305
    %v361 = vpop.f32.mrf.mxu0
    %v362 = vadd.f32 0.0, %v361
    %v363 = vpop.f32.mrf.mxu0
    %v364 = vpop.f32.mrf.mxu0
    %v365 = vadd.f32 0.0, %v364
    %v366 = vpop.f32.mrf.mxu0
    %367 = vmatprep.mubr.bf16.mxu0 0
    %368 = vmatmul.mubr.bf16.gmra.mxu0 %v307
    %v369 = vpop.f32.mrf.mxu0
    %v370 = vadd.f32 0.0, %v369
    %v371 = vpop.f32.mrf.mxu0
    %v372 = vpop.f32.mrf.mxu0
    %v373 = vadd.f32 0.0, %v372
    %v374 = vpop.f32.mrf.mxu0
    %375 = vmatprep.mubr.bf16.mxu0 0
    %376 = vmatmul.mubr.bf16.gmra.mxu0 %v309
    %v377 = vpop.f32.mrf.mxu0
    %v378 = vadd.f32 0.0, %v377
    %v379 = vpop.f32.mrf.mxu0
    %v380 = vpop.f32.mrf.mxu0
    %v381 = vadd.f32 0.0, %v380
    %v382 = vpop.f32.mrf.mxu0
    %383 = vmatprep.mubr.bf16.mxu0 0
    %384 = vmatmul.mubr.bf16.gmra.mxu0 %v311
    %v385 = vpop.f32.mrf.mxu0
    %v386 = vadd.f32 0.0, %v385
    %v387 = vpop.f32.mrf.mxu0
    %v388 = vpop.f32.mrf.mxu0
    %v389 = vadd.f32 0.0, %v388
    %v390 = vpop.f32.mrf.mxu0
    %391 = vmatprep.mubr.bf16.mxu0 0
    %392 = vmatmul.mubr.bf16.gmra.mxu0 %v313
    %v393 = vpop.f32.mrf.mxu0
    %v394 = vadd.f32 0.0, %v393
    %v395 = vpop.f32.mrf.mxu0
    %v396 = vpop.f32.mrf.mxu0
    %v397 = vadd.f32 0.0, %v396
    %v398 = vpop.f32.mrf.mxu0
    %399 = vmatprep.mubr.bf16.mxu0 0
    %400 = vmatmul.mubr.bf16.gmra.mxu0 %v315
    %v401 = vpop.f32.mrf.mxu0
    %v402 = vadd.f32 0.0, %v401
    %v403 = vpop.f32.mrf.mxu0
    %v404 = vpop.f32.mrf.mxu0
    %v405 = vadd.f32 0.0, %v404
    %v406 = vpop.f32.mrf.mxu0
    %407 = vmatprep.mubr.bf16.mxu0 0
    %408 = vmatmul.mubr.bf16.gmra.mxu0 %v317
    %v409 = vpop.f32.mrf.mxu0
    %v410 = vadd.f32 0.0, %v409
    %v411 = vpop.f32.mrf.mxu0
    %v412 = vpop.f32.mrf.mxu0
    %v413 = vadd.f32 0.0, %v412
    %v414 = vpop.f32.mrf.mxu0
    %415 = vdwg.mxu0
    %v416 = vld [vmem:[%s2] sm:$0xff]
    %v417 = vld [vmem:[%s2 + $0x8] sm:$0xff]
    %419 = vset.pattern.permute.xlu0 0
    %420 = vperm.xlu0 %419, %v416
    %v421 = vpop.permute.xlu0 %420
    %424 = vset.pattern.permute.xlu0 0
    %425 = vperm.xlu0 %424, %v417
    %v426 = vpop.permute.xlu0 %425
    %v428 = vmul.f32 %v354, %v421
    %v429 = vmul.f32 %v357, %v426
    %v430 = vmul.f32 %v362, %v421
    %v431 = vmul.f32 %v365, %v426
    %v432 = vmul.f32 %v370, %v421
    %v433 = vmul.f32 %v373, %v426
    %v434 = vmul.f32 %v378, %v421
    %v435 = vmul.f32 %v381, %v426
    %v436 = vmul.f32 %v386, %v421
    %v437 = vmul.f32 %v389, %v426
    %v438 = vmul.f32 %v394, %v421
    %v439 = vmul.f32 %v397, %v426
    %v440 = vmul.f32 %v402, %v421
    %v441 = vmul.f32 %v405, %v426
    %v442 = vmul.f32 %v410, %v421
    %v443 = vmul.f32 %v413, %v426
    %444 = vset.pattern.permute.xlu0 1
    %445 = vperm.xlu0 %444, %v416
    %v446 = vpop.permute.xlu0 %445
    %448 = vset.pattern.permute.xlu0 1
    %449 = vperm.xlu0 %448, %v417
    %v450 = vpop.permute.xlu0 %449
    %v452 = vadd.f32 %v428, %v446
    %v453 = vadd.f32 %v429, %v450
    %v454 = vadd.f32 %v430, %v446
    %v455 = vadd.f32 %v431, %v450
    %v456 = vadd.f32 %v432, %v446
    %v457 = vadd.f32 %v433, %v450
    %v458 = vadd.f32 %v434, %v446
    %v459 = vadd.f32 %v435, %v450
    %v460 = vadd.f32 %v436, %v446
    %v461 = vadd.f32 %v437, %v450
    %v462 = vadd.f32 %v438, %v446
    %v463 = vadd.f32 %v439, %v450
    %v464 = vadd.f32 %v440, %v446
    %v465 = vadd.f32 %v441, %v450
    %v466 = vadd.f32 %v442, %v446
    %v467 = vadd.f32 %v443, %v450
    %vm468 = vcmp.gt.f32.partialorder %v452, 0.0
    %vm469 = vcmp.gt.f32.partialorder %v453, 0.0
    %vm470 = vcmp.gt.f32.partialorder %v454, 0.0
    %vm471 = vcmp.gt.f32.partialorder %v455, 0.0
    %vm472 = vcmp.gt.f32.partialorder %v456, 0.0
    %vm473 = vcmp.gt.f32.partialorder %v457, 0.0
    %vm474 = vcmp.gt.f32.partialorder %v458, 0.0
    %vm475 = vcmp.gt.f32.partialorder %v459, 0.0
    %vm476 = vcmp.gt.f32.partialorder %v460, 0.0
    %vm477 = vcmp.gt.f32.partialorder %v461, 0.0
    %vm478 = vcmp.gt.f32.partialorder %v462, 0.0
    %vm479 = vcmp.gt.f32.partialorder %v463, 0.0
    %vm480 = vcmp.gt.f32.partialorder %v464, 0.0
    %vm481 = vcmp.gt.f32.partialorder %v465, 0.0
    %vm482 = vcmp.gt.f32.partialorder %v466, 0.0
    %vm483 = vcmp.gt.f32.partialorder %v467, 0.0
    %v484 = vmul.f32 %v452, 0.2
    %v485 = vmul.f32 %v453, 0.2
    %v486 = vmul.f32 %v454, 0.2
    %v487 = vmul.f32 %v455, 0.2
    %v488 = vmul.f32 %v456, 0.2
    %v489 = vmul.f32 %v457, 0.2
    %v490 = vmul.f32 %v458, 0.2
    %v491 = vmul.f32 %v459, 0.2
    %v492 = vmul.f32 %v460, 0.2
    %v493 = vmul.f32 %v461, 0.2
    %v494 = vmul.f32 %v462, 0.2
    %v495 = vmul.f32 %v463, 0.2
    %v496 = vmul.f32 %v464, 0.2
    %v497 = vmul.f32 %v465, 0.2
    %v498 = vmul.f32 %v466, 0.2
    %v499 = vmul.f32 %v467, 0.2
    %v500 = vsel %vm468, %v452, %v484
    %v501 = vsel %vm469, %v453, %v485
    %v502 = vsel %vm470, %v454, %v486
    %v503 = vsel %vm471, %v455, %v487
    %v504 = vsel %vm472, %v456, %v488
    %v505 = vsel %vm473, %v457, %v489
    %v506 = vsel %vm474, %v458, %v490
    %v507 = vsel %vm475, %v459, %v491
    %v508 = vsel %vm476, %v460, %v492
    %v509 = vsel %vm477, %v461, %v493
    %v510 = vsel %vm478, %v462, %v494
    %v511 = vsel %vm479, %v463, %v495
    %v512 = vsel %vm480, %v464, %v496
    %v513 = vsel %vm481, %v465, %v497
    %v514 = vsel %vm482, %v466, %v498
    %v515 = vsel %vm483, %v467, %v499
    %v516 = vcombine.low %v500, %v504
    %v517 = vcombine.high %v500, %v504
    %v519 = vunpack.c.l.s4 1983009808
    %v520 = vunpack.c.0.s8 %v519
    %v521 = vlaneseq
    %v522 = vshrl.u32 %v521, 7
    %v523 = vsub.s32 %v520, %v522
    %v524 = vrot.slane %v516, %v523
    %v526 = vunpack.c.l.s4 1983009808
    %v527 = vunpack.c.0.s8 %v526
    %v528 = vlaneseq
    %v529 = vshrl.u32 %v528, 7
    %v530 = vsub.s32 %v527, %v529
    %v531 = vrot.slane %v517, %v530
    %v532 = vcombine.low %v502, %v506
    %v533 = vcombine.high %v502, %v506
    %v535 = vunpack.c.l.s4 1983009808
    %v536 = vunpack.c.0.s8 %v535
    %v537 = vlaneseq
    %v538 = vshrl.u32 %v537, 7
    %v539 = vsub.s32 %v536, %v538
    %v540 = vrot.slane %v532, %v539
    %v542 = vunpack.c.l.s4 1983009808
    %v543 = vunpack.c.0.s8 %v542
    %v544 = vlaneseq
    %v545 = vshrl.u32 %v544, 7
    %v546 = vsub.s32 %v543, %v545
    %v547 = vrot.slane %v533, %v546
    %v548 = vcombine.low %v508, %v512
    %v549 = vcombine.high %v508, %v512
    %v551 = vunpack.c.l.s4 1983009808
    %v552 = vunpack.c.0.s8 %v551
    %v553 = vlaneseq
    %v554 = vshrl.u32 %v553, 7
    %v555 = vsub.s32 %v552, %v554
    %v556 = vrot.slane %v548, %v555
    %v558 = vunpack.c.l.s4 1983009808
    %v559 = vunpack.c.0.s8 %v558
    %v560 = vlaneseq
    %v561 = vshrl.u32 %v560, 7
    %v562 = vsub.s32 %v559, %v561
    %v563 = vrot.slane %v549, %v562
    %v564 = vcombine.low %v510, %v514
    %v565 = vcombine.high %v510, %v514
    %v567 = vunpack.c.l.s4 1983009808
    %v568 = vunpack.c.0.s8 %v567
    %v569 = vlaneseq
    %v570 = vshrl.u32 %v569, 7
    %v571 = vsub.s32 %v568, %v570
    %v572 = vrot.slane %v564, %v571
    %v574 = vunpack.c.l.s4 1983009808
    %v575 = vunpack.c.0.s8 %v574
    %v576 = vlaneseq
    %v577 = vshrl.u32 %v576, 7
    %v578 = vsub.s32 %v575, %v577
    %v579 = vrot.slane %v565, %v578
    %v580 = vcombine.low %v524, %v540
    %v581 = vcombine.high %v524, %v540
    %v583 = vunpack.c.l.s4 1934713408
    %v584 = vunpack.c.0.s8 %v583
    %v585 = vlaneseq
    %v586 = vshrl.u32 %v585, 7
    %v587 = vsub.s32 %v584, %v586
    %v588 = vrot.slane %v580, %v587
    %v590 = vunpack.c.l.s4 1934713408
    %v591 = vunpack.c.0.s8 %v590
    %v592 = vlaneseq
    %v593 = vshrl.u32 %v592, 7
    %v594 = vsub.s32 %v591, %v593
    %v595 = vrot.slane %v581, %v594
    %v596 = vcombine.low %v531, %v547
    %v597 = vcombine.high %v531, %v547
    %v599 = vunpack.c.l.s4 1934713408
    %v600 = vunpack.c.0.s8 %v599
    %v601 = vlaneseq
    %v602 = vshrl.u32 %v601, 7
    %v603 = vsub.s32 %v600, %v602
    %v604 = vrot.slane %v596, %v603
    %v606 = vunpack.c.l.s4 1934713408
    %v607 = vunpack.c.0.s8 %v606
    %v608 = vlaneseq
    %v609 = vshrl.u32 %v608, 7
    %v610 = vsub.s32 %v607, %v609
    %v611 = vrot.slane %v597, %v610
    %v612 = vcombine.low %v556, %v572
    %v613 = vcombine.high %v556, %v572
    %v615 = vunpack.c.l.s4 1934713408
    %v616 = vunpack.c.0.s8 %v615
    %v617 = vlaneseq
    %v618 = vshrl.u32 %v617, 7
    %v619 = vsub.s32 %v616, %v618
    %v620 = vrot.slane %v612, %v619
    %v622 = vunpack.c.l.s4 1934713408
    %v623 = vunpack.c.0.s8 %v622
    %v624 = vlaneseq
    %v625 = vshrl.u32 %v624, 7
    %v626 = vsub.s32 %v623, %v625
    %v627 = vrot.slane %v613, %v626
    %v628 = vcombine.low %v563, %v579
    %v629 = vcombine.high %v563, %v579
    %v631 = vunpack.c.l.s4 1934713408
    %v632 = vunpack.c.0.s8 %v631
    %v633 = vlaneseq
    %v634 = vshrl.u32 %v633, 7
    %v635 = vsub.s32 %v632, %v634
    %v636 = vrot.slane %v628, %v635
    %v638 = vunpack.c.l.s4 1934713408
    %v639 = vunpack.c.0.s8 %v638
    %v640 = vlaneseq
    %v641 = vshrl.u32 %v640, 7
    %v642 = vsub.s32 %v639, %v641
    %v643 = vrot.slane %v629, %v642
    %v644 = vcombine.low %v588, %v620
    %v645 = vcombine.high %v588, %v620
    %v646 = vcombine.low %v595, %v627
    %v647 = vcombine.high %v595, %v627
    %v648 = vcombine.low %v604, %v636
    %v649 = vcombine.high %v604, %v636
    %v650 = vcombine.low %v611, %v643
    %v651 = vcombine.high %v611, %v643
    %v652 = vcombine.low %v501, %v505
    %v653 = vcombine.high %v501, %v505
    %v655 = vunpack.c.l.s4 1983009808
    %v656 = vunpack.c.0.s8 %v655
    %v657 = vlaneseq
    %v658 = vshrl.u32 %v657, 7
    %v659 = vsub.s32 %v656, %v658
    %v660 = vrot.slane %v652, %v659
    %v662 = vunpack.c.l.s4 1983009808
    %v663 = vunpack.c.0.s8 %v662
    %v664 = vlaneseq
    %v665 = vshrl.u32 %v664, 7
    %v666 = vsub.s32 %v663, %v665
    %v667 = vrot.slane %v653, %v666
    %v668 = vcombine.low %v503, %v507
    %v669 = vcombine.high %v503, %v507
    %v671 = vunpack.c.l.s4 1983009808
    %v672 = vunpack.c.0.s8 %v671
    %v673 = vlaneseq
    %v674 = vshrl.u32 %v673, 7
    %v675 = vsub.s32 %v672, %v674
    %v676 = vrot.slane %v668, %v675
    %v678 = vunpack.c.l.s4 1983009808
    %v679 = vunpack.c.0.s8 %v678
    %v680 = vlaneseq
    %v681 = vshrl.u32 %v680, 7
    %v682 = vsub.s32 %v679, %v681
    %v683 = vrot.slane %v669, %v682
    %v684 = vcombine.low %v509, %v513
    %v685 = vcombine.high %v509, %v513
    %v687 = vunpack.c.l.s4 1983009808
    %v688 = vunpack.c.0.s8 %v687
    %v689 = vlaneseq
    %v690 = vshrl.u32 %v689, 7
    %v691 = vsub.s32 %v688, %v690
    %v692 = vrot.slane %v684, %v691
    %v694 = vunpack.c.l.s4 1983009808
    %v695 = vunpack.c.0.s8 %v694
    %v696 = vlaneseq
    %v697 = vshrl.u32 %v696, 7
    %v698 = vsub.s32 %v695, %v697
    %v699 = vrot.slane %v685, %v698
    %v700 = vcombine.low %v511, %v515
    %v701 = vcombine.high %v511, %v515
    %v703 = vunpack.c.l.s4 1983009808
    %v704 = vunpack.c.0.s8 %v703
    %v705 = vlaneseq
    %v706 = vshrl.u32 %v705, 7
    %v707 = vsub.s32 %v704, %v706
    %v708 = vrot.slane %v700, %v707
    %v710 = vunpack.c.l.s4 1983009808
    %v711 = vunpack.c.0.s8 %v710
    %v712 = vlaneseq
    %v713 = vshrl.u32 %v712, 7
    %v714 = vsub.s32 %v711, %v713
    %v715 = vrot.slane %v701, %v714
    %v716 = vcombine.low %v660, %v676
    %v717 = vcombine.high %v660, %v676
    %v719 = vunpack.c.l.s4 1934713408
    %v720 = vunpack.c.0.s8 %v719
    %v721 = vlaneseq
    %v722 = vshrl.u32 %v721, 7
    %v723 = vsub.s32 %v720, %v722
    %v724 = vrot.slane %v716, %v723
    %v726 = vunpack.c.l.s4 1934713408
    %v727 = vunpack.c.0.s8 %v726
    %v728 = vlaneseq
    %v729 = vshrl.u32 %v728, 7
    %v730 = vsub.s32 %v727, %v729
    %v731 = vrot.slane %v717, %v730
    %v732 = vcombine.low %v667, %v683
    %v733 = vcombine.high %v667, %v683
    %v735 = vunpack.c.l.s4 1934713408
    %v736 = vunpack.c.0.s8 %v735
    %v737 = vlaneseq
    %v738 = vshrl.u32 %v737, 7
    %v739 = vsub.s32 %v736, %v738
    %v740 = vrot.slane %v732, %v739
    %v742 = vunpack.c.l.s4 1934713408
    %v743 = vunpack.c.0.s8 %v742
    %v744 = vlaneseq
    %v745 = vshrl.u32 %v744, 7
    %v746 = vsub.s32 %v743, %v745
    %v747 = vrot.slane %v733, %v746
    %v748 = vcombine.low %v692, %v708
    %v749 = vcombine.high %v692, %v708
    %v751 = vunpack.c.l.s4 1934713408
    %v752 = vunpack.c.0.s8 %v751
    %v753 = vlaneseq
    %v754 = vshrl.u32 %v753, 7
    %v755 = vsub.s32 %v752, %v754
    %v756 = vrot.slane %v748, %v755
    %v758 = vunpack.c.l.s4 1934713408
    %v759 = vunpack.c.0.s8 %v758
    %v760 = vlaneseq
    %v761 = vshrl.u32 %v760, 7
    %v762 = vsub.s32 %v759, %v761
    %v763 = vrot.slane %v749, %v762
    %v764 = vcombine.low %v699, %v715
    %v765 = vcombine.high %v699, %v715
    %v767 = vunpack.c.l.s4 1934713408
    %v768 = vunpack.c.0.s8 %v767
    %v769 = vlaneseq
    %v770 = vshrl.u32 %v769, 7
    %v771 = vsub.s32 %v768, %v770
    %v772 = vrot.slane %v764, %v771
    %v774 = vunpack.c.l.s4 1934713408
    %v775 = vunpack.c.0.s8 %v774
    %v776 = vlaneseq
    %v777 = vshrl.u32 %v776, 7
    %v778 = vsub.s32 %v775, %v777
    %v779 = vrot.slane %v765, %v778
    %v780 = vcombine.low %v724, %v756
    %v781 = vcombine.high %v724, %v756
    %v782 = vcombine.low %v731, %v763
    %v783 = vcombine.high %v731, %v763
    %v784 = vcombine.low %v740, %v772
    %v785 = vcombine.high %v740, %v772
    %v786 = vcombine.low %v747, %v779
    %v787 = vcombine.high %v747, %v779
    %789 = vrot.lane.b32.xlu0 %v645, 32
    %v790 = vpop.permute.xlu0 %789
    %793 = vrot.lane.b32.xlu0 %v646, 64
    %v794 = vpop.permute.xlu0 %793
    %797 = vrot.lane.b32.xlu0 %v647, 96
    %v798 = vpop.permute.xlu0 %797
    %801 = vrot.lane.b32.xlu0 %v649, 32
    %v802 = vpop.permute.xlu0 %801
    %805 = vrot.lane.b32.xlu0 %v650, 64
    %v806 = vpop.permute.xlu0 %805
    %809 = vrot.lane.b32.xlu0 %v651, 96
    %v810 = vpop.permute.xlu0 %809
    %813 = vrot.lane.b32.xlu0 %v781, 32
    %v814 = vpop.permute.xlu0 %813
    %817 = vrot.lane.b32.xlu0 %v782, 64
    %v818 = vpop.permute.xlu0 %817
    %821 = vrot.lane.b32.xlu0 %v783, 96
    %v822 = vpop.permute.xlu0 %821
    %825 = vrot.lane.b32.xlu0 %v785, 32
    %v826 = vpop.permute.xlu0 %825
    %829 = vrot.lane.b32.xlu0 %v786, 64
    %v830 = vpop.permute.xlu0 %829
    %833 = vrot.lane.b32.xlu0 %v787, 96
    %v834 = vpop.permute.xlu0 %833
    %v836 = vsel %vm261, %v644, %v790
    %vm837 = vcmask 523264
    %v838 = vsel %vm837, %v836, %v794
    %vm839 = vcmask 785408
    %v840 = vsel %vm839, %v838, %v798
    %v841 = vsel %vm261, %v648, %v802
    %v842 = vsel %vm837, %v841, %v806
    %v843 = vsel %vm839, %v842, %v810
    %v844 = vsel %vm261, %v780, %v814
    %v845 = vsel %vm837, %v844, %v818
    %v846 = vsel %vm839, %v845, %v822
    %v847 = vsel %vm261, %v784, %v826
    %v848 = vsel %vm837, %v847, %v830
    %v849 = vsel %vm839, %v848, %v834
    %850 = vst [vmem:[#allocation5] sm:$0xff] %v840
    %851 = vst [vmem:[#allocation5 + $0x8] sm:$0xff] %v843
    %852 = vst [vmem:[#allocation5 + $0x10] sm:$0xff] %v846
    %853 = vst [vmem:[#allocation5 + $0x18] sm:$0xff] %v849
    // Predicated region
    $region18: #{tpu_custom_call.1} parent=1 // pred_check
      _
    $region19: #{tpu_custom_call.1} parent=1 // pred_check_branch
      %855 = sbr.rel (0) target = $region21
    $region20: #{tpu_custom_call.1} parent=1 // pred_region
      %s857 = ssub.s32 512, 512
      %858 = vsyncadd [#allocation4], %s857
      %s860 = sshll.u32 [#allocation5], 4
      %s861 = int_to_ptr.vmem [resolvable:$true] %s860
      %863 = dma.vmem_to_hbm [thread:$0]  %s861, 512, %s3, [#allocation4]
    $region21: #{tpu_custom_call.1} parent=1 // pred_fallthru
      _
    // Predicated region
    $region22: #{tpu_custom_call.1} parent=1 // pred_check
      _
    $region23: #{tpu_custom_call.1} parent=1 // pred_check_branch
      %865 = sbr.rel (0) target = $region25
    $region24: #{tpu_custom_call.1} parent=1 // pred_region
      %866 = dma.done [#allocation4], 512
    $region25: #{tpu_custom_call.1} parent=1 // pred_fallthru
      _
    %867 = vsyncpa [#allocation3], 1
    %868 = vsyncpa [#allocation4], 1

</llo_original>
